<compile_context>
chip_gen: v6e
topology: v6e:2x2x1
jax: 0.10.0
libtpu: 0.0.40
codegen_flags: <defaults>
</compile_context>

<pallas_src>
import functools

import jax
import jax.numpy as jnp
from jax import lax
from jax.experimental import pallas as pl
from jax.experimental.pallas import tpu as pltpu

_LANE = 128
_SUBLANE = 8
_TWO_PASS_BLOCK_BYTES = 4 * 1024 * 1024    # ~4 MiB row tiles in the fallback path
_SINGLE_PASS_STEP_TARGET = 8               # >=8 grid steps: pipelining + 2 TCs on v7x


def _round_up(x, m):
    return (x + m - 1) // m * m


def _vmem_capacity_bytes():
    """Physical VMEM of the local TPU; conservative 64 MiB (v7x-sized) fallback."""
    try:
        return int(pltpu.get_tpu_info().vmem_capacity_bytes)
    except Exception:
        return 64 * 1024 * 1024


def _pick_single_pass_tile(d_pad, n_rows, max_block_elems):
    """Largest 128-multiple divisor of d_pad whose (n_rows, td) block fits the
    element budget, preferring tiles that give >= _SINGLE_PASS_STEP_TARGET grid
    steps (ties broken by the wider tile)."""
    cands = [td for td in range(_LANE, d_pad + 1, _LANE) if d_pad % td == 0]
    feasible = [td for td in cands if n_rows * td <= max_block_elems]
    if not feasible:
        return None
    return max(feasible,
               key=lambda td: (min(d_pad // td, _SINGLE_PASS_STEP_TARGET), td))


def _largest_divisor_tile(d_pad, cap):
    """Largest 128-multiple divisor of d_pad that is <= cap (handles 384/640/...)."""
    best = _LANE
    td = _LANE
    while td <= min(d_pad, cap):
        if d_pad % td == 0:
            best = td
        td += _LANE
    return best


# --------------------------------------------------------------------------
# Single-pass kernel: whole (N, td) column slab resident, stats + normalize.
# --------------------------------------------------------------------------
def _bn_single_pass_kernel(x_ref, g_ref, b_ref, o_ref, *, eps, n_rows):
    xf = x_ref[...].astype(jnp.float32)                                # (N, td)
    inv_n = jnp.float32(1.0 / n_rows)
    s = jnp.sum(xf, axis=0, keepdims=True)                             # (1, td)
    ss = jnp.sum(xf * xf, axis=0, keepdims=True)                       # f32 square
    mean = s * inv_n
    var = jnp.maximum(ss * inv_n - mean * mean, 0.0)                   # clamp >= 0
    inv_std = lax.rsqrt(var + jnp.float32(eps))
    # Fold the affine: out = x * scale + shift  (2 VPU ops / element).
    scale = g_ref[...] * inv_std                                       # (1, td)
    shift = b_ref[...] - mean * scale                                  # (1, td)
    o_ref[...] = (xf * scale + shift).astype(o_ref.dtype)


# --------------------------------------------------------------------------
# Two-pass fallback (large N): pass 1 accumulates sum / sumsq per column.
# Tail rows of the (possibly partial) last row block are masked in-kernel,
# so no row padding / slicing copies are needed.
# --------------------------------------------------------------------------
def _bn_stats_kernel(x_ref, sum_ref, sumsq_ref, *, n_rows, row_tile, mask_rows):
    @pl.when(pl.program_id(1) == 0)
    def _():
        sum_ref[...] = jnp.zeros_like(sum_ref)
        sumsq_ref[...] = jnp.zeros_like(sumsq_ref)

    xf = x_ref[...].astype(jnp.float32)                                # (tn, td)
    if mask_rows:
        row = (lax.broadcasted_iota(jnp.int32, xf.shape, 0)
               + pl.program_id(1) * row_tile)
        xf = jnp.where(row < n_rows, xf, 0.0)                          # zero OOB rows
    sum_ref[...] += jnp.sum(xf, axis=0, keepdims=True)
    sumsq_ref[...] += jnp.sum(xf * xf, axis=0, keepdims=True)


def _bn_normalize_kernel(x_ref, scale_ref, shift_ref, o_ref):
    o_ref[...] = (x_ref[...].astype(jnp.float32) * scale_ref[...]
                  + shift_ref[...]).astype(o_ref.dtype)


# --------------------------------------------------------------------------
# Wrapper
# --------------------------------------------------------------------------
def batchnorm_pallas(x, gamma, beta, eps=1e-5, *, force_two_pass=False, row_tile=None):
    """x: (B, S, D); gamma, beta: (D,). Returns (B, S, D)."""
    B, S, D = x.shape
    N = B * S
    x2d = x.reshape(N, D)
    itemsize = jnp.dtype(x.dtype).itemsize

    # Pad feature dim to a multiple of 128 so every block is lane-dense.
    D_pad = _round_up(D, _LANE)
    if D_pad != D:
        x2d = jnp.pad(x2d, ((0, 0), (0, D_pad - D)))
        gamma = jnp.pad(gamma, (0, D_pad - D))
        beta = jnp.pad(beta, (0, D_pad - D))
    g2d = gamma.reshape(1, D_pad).astype(jnp.float32)
    b2d = beta.reshape(1, D_pad).astype(jnp.float32)

    # Generation-aware VMEM budget (v5e/v6e: 128 MiB, v7x: 64 MiB).
    vmem_cap = _vmem_capacity_bytes()
    vmem_limit = (vmem_cap * 13) // 16                  # ~104 MiB / ~52 MiB
    budget = max(vmem_limit - (8 << 20), 0)             # headroom for compiler scratch
    # Per block element: 2x double-buffered in + 2x out (input dtype) + ~2 f32 temps.
    max_block_elems = budget // (4 * itemsize + 8)

    td = None if force_two_pass else _pick_single_pass_tile(D_pad, N, max_block_elems)

    if td is not None:
        # ---------------- single-pass path: 1 read + 1 write of x ----------------
        out2d = pl.pallas_call(
            functools.partial(_bn_single_pass_kernel, eps=eps, n_rows=N),
            out_shape=jax.ShapeDtypeStruct((N, D_pad), x.dtype),
            grid=(D_pad // td,),
            in_specs=[
                pl.BlockSpec((N, td), lambda j: (0, j)),
                pl.BlockSpec((1, td), lambda j: (0, j)),
                pl.BlockSpec((1, td), lambda j: (0, j)),
            ],
            out_specs=pl.BlockSpec((N, td), lambda j: (0, j)),
            compiler_params=pltpu.CompilerParams(
                dimension_semantics=("parallel",),
                vmem_limit_bytes=vmem_limit,
            ),
        )(x2d, g2d, b2d)
    else:
        # ---------------- two-pass fallback: 2 reads + 1 write of x --------------
        td = _largest_divisor_tile(D_pad, 1024)
        if row_tile is not None:
            tn = row_tile
        else:
            tn = max(_SUBLANE,
                     (_TWO_PASS_BLOCK_BYTES // (td * itemsize)) // _SUBLANE * _SUBLANE)
        if tn >= N:
            tn = N                                      # full-dim block is always legal
        assert tn == N or tn % _SUBLANE == 0, "row tile must be a multiple of 8"
        n_row_blocks = pl.cdiv(N, tn)
        mask_rows = (N % tn) != 0

        x_sum, x_sumsq = pl.pallas_call(
            functools.partial(_bn_stats_kernel, n_rows=N, row_tile=tn,
                              mask_rows=mask_rows),
            out_shape=(
                jax.ShapeDtypeStruct((1, D_pad), jnp.float32),
                jax.ShapeDtypeStruct((1, D_pad), jnp.float32),
            ),
            grid=(D_pad // td, n_row_blocks),           # reduction (N) axis last
            in_specs=[pl.BlockSpec((tn, td), lambda j, i: (i, j))],
            out_specs=(
                pl.BlockSpec((1, td), lambda j, i: (0, j)),
                pl.BlockSpec((1, td), lambda j, i: (0, j)),
            ),
            compiler_params=pltpu.CompilerParams(
                dimension_semantics=("parallel", "arbitrary"),
                vmem_limit_bytes=vmem_limit,
            ),
        )(x2d)

        # Tiny O(D) epilogue: fold mean/var/gamma/beta into per-column scale/shift.
        inv_n = jnp.float32(1.0 / N)                    # true row count
        mean = x_sum * inv_n
        var = jnp.maximum(x_sumsq * inv_n - mean * mean, 0.0)
        inv_std = lax.rsqrt(var + jnp.float32(eps))
        scale = g2d * inv_std
        shift = b2d - mean * scale

        out2d = pl.pallas_call(
            _bn_normalize_kernel,
            out_shape=jax.ShapeDtypeStruct((N, D_pad), x.dtype),
            grid=(D_pad // td, n_row_blocks),
            in_specs=[
                pl.BlockSpec((tn, td), lambda j, i: (i, j)),
                pl.BlockSpec((1, td), lambda j, i: (0, j)),
                pl.BlockSpec((1, td), lambda j, i: (0, j)),
            ],
            out_specs=pl.BlockSpec((tn, td), lambda j, i: (i, j)),
            input_output_aliases={0: 0},                # write output in place of x2d
            compiler_params=pltpu.CompilerParams(
                dimension_semantics=("parallel", "parallel"),
                vmem_limit_bytes=vmem_limit,
            ),
        )(x2d, scale, shift)

    if D_pad != D:
        out2d = out2d[:, :D]
    return out2d.reshape(B, S, D)


# --------------------------------------------------------------------------
# Pure-JAX reference
# --------------------------------------------------------------------------
def batchnorm_ref(x, gamma, beta, eps=1e-5):
    xf = x.astype(jnp.float32)
    mean = jnp.mean(xf, axis=(0, 1), keepdims=True)
    var = jnp.mean((xf - mean) ** 2, axis=(0, 1), keepdims=True)
    x_norm = (xf - mean) / jnp.sqrt(var + eps)
    return (gamma[None, None, :] * x_norm + beta[None, None, :]).astype(x.dtype)


if __name__ == "__main__":
    key = jax.random.PRNGKey(0)
    k1, k2, k3, k4, k5 = jax.random.split(key, 5)

    # Primary: module-shaped input (batch, seq_len, d_model); gamma=beta=ones
    # exactly as in the module's __init__.
    B, S, D = 2, 8, 32
    x = jax.random.normal(k1, (B, S, D), dtype=jnp.float32)
    gamma = jnp.ones((D,), dtype=jnp.float32)
    beta = jnp.ones((D,), dtype=jnp.float32)
    out = jax.block_until_ready(batchnorm_pallas(x, gamma, beta, eps=1e-5))
    ref = batchnorm_ref(x, gamma, beta, eps=1e-5)
    assert out.shape == (B, S, D)
    assert jnp.allclose(out, ref, atol=1e-4, rtol=1e-4), "single-pass mismatch vs reference"

    # Single-pass path with N = B*S not a multiple of 8 (sublane-masked reduction).
    B2, S2, D2 = 3, 5, 32
    x2 = jax.random.normal(k2, (B2, S2, D2), dtype=jnp.float32)
    g2 = jax.random.normal(k3, (D2,), dtype=jnp.float32)
    b2 = jax.random.normal(k4, (D2,), dtype=jnp.float32)
    out2 = jax.block_until_ready(batchnorm_pallas(x2, g2, b2, eps=1e-5))
    assert jnp.allclose(out2, batchnorm_ref(x2, g2, b2, eps=1e-5),
                        atol=1e-4, rtol=1e-4), "single-pass (N % 8 != 0) mismatch"

    # Forced two-pass path with a partial last row block (N=40, tile=16) to
    # exercise the in-kernel row mask and the aliased normalize pass.
    B3, S3, D3 = 2, 20, 32
    x3 = jax.random.normal(k5, (B3, S3, D3), dtype=jnp.float32)
    out3 = jax.block_until_ready(
        batchnorm_pallas(x3, g2, b2, eps=1e-5, force_two_pass=True, row_tile=16))
    assert out3.shape == (B3, S3, D3)
    assert jnp.allclose(out3, batchnorm_ref(x3, g2, b2, eps=1e-5),
                        atol=1e-4, rtol=1e-4), "two-pass mismatch vs reference"

    print("KERNEL_OK")
</pallas_src>

<mosaic_0001>
module attributes {stable_mosaic.version = 11 : i64} {
  func.func @_bn_single_pass_kernel(%arg0: i32, %arg1: memref<16x128xf32, #tpu.memory_space<vmem>>, %arg2: memref<1x128xf32, #tpu.memory_space<vmem>>, %arg3: memref<1x128xf32, #tpu.memory_space<vmem>>, %arg4: memref<16x128xf32, #tpu.memory_space<vmem>>) attributes {dimension_semantics = [#tpu.dimension_semantics<parallel>], iteration_bounds = array<i64: 1>, scalar_prefetch = 0 : i64, scratch_operands = 0 : i64, tpu.core_type = #tpu.core_type<tc>, window_params = [{transform_indices = @transform_0, window_bounds = array<i64: 16, 128>}, {transform_indices = @transform_1, window_bounds = array<i64: 1, 128>}, {transform_indices = @transform_2, window_bounds = array<i64: 1, 128>}, {transform_indices = @transform_3, window_bounds = array<i64: 16, 128>}]} {
    %c0 = arith.constant 0 : index
    %c0_0 = arith.constant 0 : index
    %0 = vector.load %arg1[%c0, %c0_0] : memref<16x128xf32, #tpu.memory_space<vmem>>, vector<16x128xf32>
    %cst = arith.constant dense<0.000000e+00> : vector<128xf32>
    %1 = vector.multi_reduction <add>, %0, %cst [0] : vector<16x128xf32> to vector<128xf32>
    %2 = vector.shape_cast %1 : vector<128xf32> to vector<1x128xf32>
    %3 = arith.mulf %0, %0 : vector<16x128xf32>
    %cst_1 = arith.constant dense<0.000000e+00> : vector<128xf32>
    %4 = vector.multi_reduction <add>, %3, %cst_1 [0] : vector<16x128xf32> to vector<128xf32>
    %5 = vector.shape_cast %4 : vector<128xf32> to vector<1x128xf32>
    %cst_2 = arith.constant 6.250000e-02 : f32
    %6 = vector.broadcast %cst_2 : f32 to vector<1x128xf32>
    %7 = arith.mulf %2, %6 : vector<1x128xf32>
    %cst_3 = arith.constant 6.250000e-02 : f32
    %8 = vector.broadcast %cst_3 : f32 to vector<1x128xf32>
    %9 = arith.mulf %5, %8 : vector<1x128xf32>
    %10 = arith.mulf %7, %7 : vector<1x128xf32>
    %11 = arith.subf %9, %10 : vector<1x128xf32>
    %cst_4 = arith.constant 0.000000e+00 : f32
    %12 = vector.broadcast %cst_4 : f32 to vector<1x128xf32>
    %13 = arith.maximumf %11, %12 : vector<1x128xf32>
    %cst_5 = arith.constant 9.99999974E-6 : f32
    %14 = vector.broadcast %cst_5 : f32 to vector<1x128xf32>
    %15 = arith.addf %13, %14 : vector<1x128xf32>
    %16 = math.rsqrt %15 : vector<1x128xf32>
    %c0_6 = arith.constant 0 : index
    %c0_7 = arith.constant 0 : index
    %17 = vector.load %arg2[%c0_6, %c0_7] : memref<1x128xf32, #tpu.memory_space<vmem>>, vector<1x128xf32>
    %18 = arith.mulf %17, %16 : vector<1x128xf32>
    %c0_8 = arith.constant 0 : index
    %c0_9 = arith.constant 0 : index
    %19 = vector.load %arg3[%c0_8, %c0_9] : memref<1x128xf32, #tpu.memory_space<vmem>>, vector<1x128xf32>
    %20 = arith.mulf %7, %18 : vector<1x128xf32>
    %21 = arith.subf %19, %20 : vector<1x128xf32>
    %22 = vector.broadcast %18 : vector<1x128xf32> to vector<16x128xf32>
    %23 = arith.mulf %0, %22 : vector<16x128xf32>
    %24 = vector.broadcast %21 : vector<1x128xf32> to vector<16x128xf32>
    %25 = arith.addf %23, %24 : vector<16x128xf32>
    %c0_10 = arith.constant 0 : index
    %c0_11 = arith.constant 0 : index
    %26 = vector.load %arg4[%c0_10, %c0_11] : memref<16x128xf32, #tpu.memory_space<vmem>>, vector<16x128xf32>
    tpu.vector_store %arg4[%c0_10, %c0_11], %25 {strides = array<i32>} : memref<16x128xf32, #tpu.memory_space<vmem>>, vector<16x128xf32>,
    return
  }
  func.func @transform_0(%arg0: i32) -> (i32, i32) {
    %c0_i32 = arith.constant 0 : i32
    %c0_i32_0 = arith.constant 0 : i32
    return %c0_i32, %arg0 : i32, i32
  }
  func.func @transform_1(%arg0: i32) -> (i32, i32) {
    %c0_i32 = arith.constant 0 : i32
    %c0_i32_0 = arith.constant 0 : i32
    return %c0_i32, %arg0 : i32, i32
  }
  func.func @transform_2(%arg0: i32) -> (i32, i32) {
    %c0_i32 = arith.constant 0 : i32
    %c0_i32_0 = arith.constant 0 : i32
    return %c0_i32, %arg0 : i32, i32
  }
  func.func @transform_3(%arg0: i32) -> (i32, i32) {
    %c0_i32 = arith.constant 0 : i32
    %c0_i32_0 = arith.constant 0 : i32
    return %c0_i32, %arg0 : i32, i32
  }
}

</mosaic_0001>

<llo_original>
// kernel: tpu_custom_call.1
$region0: #{tpu_custom_call.1}
  #allocation0 [shape = 'u32[]', space=smem, size = 0x4, offset = 0x4, fixed_abs, tag = 'smem constant byte address 0x4 - core index']
  #allocation1 [shape = 'u32[144,128]{1,0:T(1,128)}', space=vmem, size = 0x12000, scoped, tag = 'internal scratch']
  %s0 = inlined_call_operand.hbm [shape: f32[16,128], index: 0, kind: input, shape index: {}]
  %s1 = inlined_call_operand.vmem [shape: f32[1,128], index: 1, kind: input, shape index: {}]
  %s2 = inlined_call_operand.vmem [shape: f32[1,128], index: 2, kind: input, shape index: {}]
  %s3 = inlined_call_operand.hbm [shape: f32[16,128], index: 3, kind: output, shape index: {}]
  %s4 = sld [smem:[#allocation0]]
  $region26: #{tpu_custom_call.1} parent=0
    _
  %s6 = ssub.s32 1, %s4
  %s7 = scalar_select 0, %s6, %s4
  $region1: #{tpu_custom_call.1} parent=0
    #allocation2 [shape = 'u8[8192]{0}', space=vmem, size = 0x2000, scoped, tag = 'input window, operand 0, single buffered']
    #allocation3 [shape = 's32[1]{0}', space=sflag, size = 0x4, scoped, tag = 'scoped memory for tpu_custom_call.1']
    #allocation4 [shape = 's32[1]{0}', space=sflag, size = 0x4, scoped, tag = 'scoped memory for tpu_custom_call.1']
    #allocation5 [shape = 'u8[8192]{0}', space=vmem, size = 0x2000, scoped, tag = 'output window, operand 0, single buffered']
    %8 = vsyncpa [#allocation3], 0
    %9 = vsyncpa [#allocation4], 0
    // Predicated region
    $region2: #{tpu_custom_call.1} parent=1 // pred_check
      _
    $region3: #{tpu_custom_call.1} parent=1 // pred_check_branch
      %11 = sbr.rel (0) target = $region5
    $region4: #{tpu_custom_call.1} parent=1 // pred_region
      %s13 = ssub.s32 256, 256
      %14 = vsyncadd [#allocation3], %s13
      %s15 = sshll.u32 [#allocation2], 4
      %s16 = int_to_ptr.vmem [resolvable:$true] %s15
      %21 = dma.hbm_to_vmem [thread:$0]  %s0, 256, %s16, [#allocation3], 128, 128, 8
    $region5: #{tpu_custom_call.1} parent=1 // pred_fallthru
      _
    // Predicated region
    $region6: #{tpu_custom_call.1} parent=1 // pred_check
      _
    $region7: #{tpu_custom_call.1} parent=1 // pred_check_branch
      %23 = sbr.rel (0) target = $region9
    $region8: #{tpu_custom_call.1} parent=1 // pred_region
      _
    $region9: #{tpu_custom_call.1} parent=1 // pred_fallthru
      _
    // Predicated region
    $region10: #{tpu_custom_call.1} parent=1 // pred_check
      _
    $region11: #{tpu_custom_call.1} parent=1 // pred_check_branch
      %25 = sbr.rel (0) target = $region13
    $region12: #{tpu_custom_call.1} parent=1 // pred_region
      _
    $region13: #{tpu_custom_call.1} parent=1 // pred_fallthru
      _
    // Predicated region
    $region14: #{tpu_custom_call.1} parent=1 // pred_check
      _
    $region15: #{tpu_custom_call.1} parent=1 // pred_check_branch
      %27 = sbr.rel (0) target = $region17
    $region16: #{tpu_custom_call.1} parent=1 // pred_region
      %28 = dma.done [#allocation3], 256
    $region17: #{tpu_custom_call.1} parent=1 // pred_fallthru
      _
    %v29 = vld [vmem:[#allocation2] sm:$0xff]
    %v30 = vld [vmem:[#allocation2 + $0x8] sm:$0xff]
    %v31 = vadd.f32 %v29, %v30
    %v32 = vrot.slane %v31, 4
    %v33 = vadd.f32 %v31, %v32
    %v34 = vrot.slane %v33, 2
    %v35 = vadd.f32 %v33, %v34
    %v36 = vrot.slane %v35, 1
    %v37 = vadd.f32 %v35, %v36
    %v38 = vmul.f32 %v29, %v29
    %v39 = vmul.f32 %v30, %v30
    %v40 = vadd.f32 %v38, %v39
    %v41 = vrot.slane %v40, 4
    %v42 = vadd.f32 %v40, %v41
    %v43 = vrot.slane %v42, 2
    %v44 = vadd.f32 %v42, %v43
    %v45 = vrot.slane %v44, 1
    %v46 = vadd.f32 %v44, %v45
    %v47 = vmul.f32 %v37, 0.0625
    %v48 = vmul.f32 %v46, 0.0625
    %v49 = vmul.f32 %v47, %v47
    %v50 = vsub.f32 %v48, %v49
    %v51 = vmax.f32 %v50, 0.0
    %v52 = vadd.f32 %v51, 1e-05
    %v53 = vrsqrt.pop %v52
    %v54 = vld [vmem:[%s1] sm:$0x1]
    %v55 = vmul.f32 %v54, %v53
    %v56 = vld [vmem:[%s2] sm:$0x1]
    %v57 = vmul.f32 %v47, %v55
    %v58 = vsub.f32 %v56, %v57
    %v60 = vlaneseq
    %v61 = vshrl.u32 %v60, 7
    %v62 = vsub.s32 0, %v61
    %v63 = vrot.slane %v55, %v62
    %v65 = vmul.f32 %v29, %v63
    %v66 = vmul.f32 %v30, %v63
    %v68 = vlaneseq
    %v69 = vshrl.u32 %v68, 7
    %v70 = vsub.s32 0, %v69
    %v71 = vrot.slane %v58, %v70
    %v73 = vadd.f32 %v65, %v71
    %v74 = vadd.f32 %v66, %v71
    %75 = vst [vmem:[#allocation5] sm:$0xff] %v73
    %76 = vst [vmem:[#allocation5 + $0x8] sm:$0xff] %v74
    // Predicated region
    $region18: #{tpu_custom_call.1} parent=1 // pred_check
      _
    $region19: #{tpu_custom_call.1} parent=1 // pred_check_branch
      %78 = sbr.rel (0) target = $region21
    $region20: #{tpu_custom_call.1} parent=1 // pred_region
      %s80 = ssub.s32 256, 256
      %81 = vsyncadd [#allocation4], %s80
      %s82 = sshll.u32 [#allocation5], 4
      %s83 = int_to_ptr.vmem [resolvable:$true] %s82
      %88 = dma.vmem_to_hbm [thread:$0]  %s83, 256, %s3, [#allocation4], 128, 128, 8
    $region21: #{tpu_custom_call.1} parent=1 // pred_fallthru
      _
    // Predicated region
    $region22: #{tpu_custom_call.1} parent=1 // pred_check
      _
    $region23: #{tpu_custom_call.1} parent=1 // pred_check_branch
      %90 = sbr.rel (0) target = $region25
    $region24: #{tpu_custom_call.1} parent=1 // pred_region
      %91 = dma.done [#allocation4], 256
    $region25: #{tpu_custom_call.1} parent=1 // pred_fallthru
      _
    %92 = vsyncpa [#allocation3], 1
    %93 = vsyncpa [#allocation4], 1

</llo_original>
